<compile_context>
chip_gen: v7x
topology: tpu7x:2x2x1
jax: 0.10.0
libtpu: 0.0.40
codegen_flags: <defaults>
</compile_context>

<pallas_src>
import functools

import jax
import jax.numpy as jnp
from jax import lax
from jax.experimental import pallas as pl
from jax.experimental.pallas import tpu as pltpu


def _residual_norm_kernel(seed_ref, x_ref, y_ref, gamma_ref, beta_ref, o_ref,
                          *, p: float, training: bool, eps: float, tile_m: int):
    # Keep HBM traffic in the input dtype; upcast to f32 only for the statistics math.
    y = y_ref[...].astype(jnp.float32)

    if training and p > 0.0:
        if p >= 1.0:
            y = jnp.zeros_like(y)
        else:
            rows, cols = y.shape
            seed_u = seed_ref[0].astype(jnp.uint32)
            base_row = (pl.program_id(0) * tile_m).astype(jnp.uint32)

            # Fully mix only the cheap (tile_m,1) row ids and (1,D) column ids ...
            rid = lax.broadcasted_iota(jnp.int32, (rows, 1), 0).astype(jnp.uint32) + base_row
            cid = lax.broadcasted_iota(jnp.int32, (1, cols), 1).astype(jnp.uint32)

            def _fmix32(h):   # murmur3 finalizer (wrapping uint32 arithmetic)
                h = h ^ (h >> jnp.uint32(16))
                h = h * jnp.uint32(0x85EBCA6B)
                h = h ^ (h >> jnp.uint32(13))
                h = h * jnp.uint32(0xC2B2AE35)
                h = h ^ (h >> jnp.uint32(16))
                return h

            rh = _fmix32(rid ^ (seed_u * jnp.uint32(0x9E3779B9)))
            ch = _fmix32(cid + jnp.uint32(0x9E3779B9))

            # ... then only a few VALU ops per element: combine + one mix round.
            h = rh ^ ch
            h = h * jnp.uint32(0x27D4EB2F)
            h = h ^ (h >> jnp.uint32(15))

            # Integer-domain keep test on the top 24 bits (no int->float convert).
            thr = jnp.int32(int(round(min(p, 1.0) * float(1 << 24))))
            keep = (h >> jnp.uint32(8)).astype(jnp.int32) >= thr
            scale = jnp.float32(1.0 / (1.0 - p))
            y = jnp.where(keep, y * scale, jnp.float32(0.0))

    s = x_ref[...].astype(jnp.float32) + y                  # residual add (x32/y32 die here)
    mean = jnp.mean(s, axis=-1, keepdims=True)               # LayerNorm reduce
    c = s - mean
    var = jnp.mean(c * c, axis=-1, keepdims=True)
    inv = lax.rsqrt(var + eps)
    # gamma/beta arrive as f32 (1, D) blocks; no per-tile casts.
    o_ref[...] = (c * (inv * gamma_ref[...]) + beta_ref[...]).astype(o_ref.dtype)


def _round_up(a: int, b: int) -> int:
    return ((a + b - 1) // b) * b


def _vmem_config():
    """(tile budget, scoped vmem limit, max rows per tile) per TPU generation."""
    try:
        cap = int(pltpu.get_tpu_info().vmem_capacity_bytes)
    except Exception:  # unknown / interpret -> be conservative
        cap = 64 * 1024 * 1024
    if cap >= 128 * 1024 * 1024:                 # v5e / v6e: 128 MiB VMEM
        return 48 * 1024 * 1024, 96 * 1024 * 1024, 4096
    return 24 * 1024 * 1024, 48 * 1024 * 1024, 1024   # v7x: 64 MiB per TensorCore


def _pick_tile_m(M: int, D: int, itemsize: int):
    budget, vmem_limit, max_rows = _vmem_config()
    # 6 double-buffered I/O tiles (x, y, out) in the input dtype + ~4 live f32
    # temporaries per element inside the kernel (s, c, dropout hash, output).
    per_row = max(D * (6 * itemsize + 16), 1)
    t = budget // per_row
    t = min(t, max_rows)
    # Dual-TC (v7x megacore): make sure the grid has at least 2 steps when M allows.
    t = min(t, _round_up((M + 1) // 2, 8))
    t = max(8, (t // 8) * 8)                     # sublane alignment
    if t >= M:
        return M, vmem_limit                     # single full block (block dim == array dim)
    # Prefer a multiple-of-8 divisor of M: no padding, no partial blocks.
    for cand in range(t, 7, -8):
        if M % cand == 0:
            return cand, vmem_limit
    # Ragged fallback: cdiv grid with a partial last block (boundary reads are padded,
    # boundary writes masked by Pallas) -- still no extra HBM copies.
    return t, vmem_limit


def residual_connection(x, y, gamma, beta, *, p=0.1, training=False, seed=0,
                        eps=1e-5, tile_m=None):
    """x, y: (B, S, D).  Returns LayerNorm(x + Dropout_p(y)) over the last dim."""
    B, S, D = x.shape
    M = B * S
    xf = x.reshape(M, D)
    yf = y.reshape(M, D)
    # LayerNorm affine params stay float32 end-to-end (matches PyTorch).
    gamma2 = jnp.asarray(gamma, jnp.float32).reshape(1, D)
    beta2 = jnp.asarray(beta, jnp.float32).reshape(1, D)

    auto_tile_m, vmem_limit = _pick_tile_m(M, D, jnp.dtype(x.dtype).itemsize)
    if tile_m is None:
        tile_m = auto_tile_m

    grid_m = pl.cdiv(M, tile_m)

    # TODO(synk): if d_model % 128 != 0, stores are lane-masked; a padded-D variant with a
    # masked reduction would trade that against extra pad/slice HBM copies, so full-D
    # blocks are kept here (d_model is a multiple of 128 for typical transformer configs).
    kernel = functools.partial(_residual_norm_kernel, p=float(p),
                               training=bool(training), eps=float(eps),
                               tile_m=int(tile_m))

    out = pl.pallas_call(
        kernel,
        out_shape=jax.ShapeDtypeStruct((M, D), x.dtype),
        grid_spec=pltpu.PrefetchScalarGridSpec(
            num_scalar_prefetch=1,
            grid=(grid_m,),
            in_specs=[
                pl.BlockSpec((tile_m, D), lambda i, seed: (i, 0)),   # x tile
                pl.BlockSpec((tile_m, D), lambda i, seed: (i, 0)),   # y tile
                pl.BlockSpec((1, D), lambda i, seed: (0, 0)),        # gamma (f32, resident)
                pl.BlockSpec((1, D), lambda i, seed: (0, 0)),        # beta  (f32, resident)
            ],
            out_specs=pl.BlockSpec((tile_m, D), lambda i, seed: (i, 0)),
        ),
        compiler_params=pltpu.CompilerParams(
            dimension_semantics=("parallel",),       # megacore sharding on v7x
            vmem_limit_bytes=int(vmem_limit)),
    )(jnp.array([seed], jnp.int32), xf, yf, gamma2, beta2)

    return out.reshape(B, S, D)


def _layernorm_ref(s, gamma, beta, eps=1e-5):
    mean = jnp.mean(s, axis=-1, keepdims=True)
    var = jnp.mean((s - mean) ** 2, axis=-1, keepdims=True)
    return (s - mean) * lax.rsqrt(var + eps) * gamma + beta


if __name__ == "__main__":
    B, S, D = 2, 8, 32
    key = jax.random.PRNGKey(0)
    kx, kw, kg, kb = jax.random.split(key, 4)

    x = jax.random.normal(kx, (B, S, D), dtype=jnp.float32)

    # LayerNorm parameters (PyTorch inits gamma=1, beta=0; perturb to exercise the affine).
    gamma = 1.0 + 0.1 * jax.random.normal(kg, (D,), dtype=jnp.float32)
    beta = 0.1 * jax.random.normal(kb, (D,), dtype=jnp.float32)

    # Synthetic "sublayer": a deterministic linear map, computed in plain JAX
    # (the module receives the sublayer as an opaque callable).
    W = 0.05 * jax.random.normal(kw, (D, D), dtype=jnp.float32)
    y = x @ W

    # Eval mode (dropout = identity): check against plain-JAX reference.
    out_eval = residual_connection(x, y, gamma, beta, p=0.1, training=False)
    jax.block_until_ready(out_eval)
    ref = _layernorm_ref(x + y, gamma, beta)
    assert jnp.allclose(out_eval, ref, atol=1e-5, rtol=1e-5), "mismatch vs reference"

    # Train mode: exercises the in-kernel (hash-based) dropout path.
    out_train = residual_connection(x, y, gamma, beta, p=0.1, training=True, seed=123)
    jax.block_until_ready(out_train)
    assert out_train.shape == (B, S, D)
    assert bool(jnp.all(jnp.isfinite(out_train)))

    print("KERNEL_OK")
</pallas_src>

<mosaic_0001>
module attributes {stable_mosaic.version = 11 : i64} {
  func.func @_residual_norm_kernel(%arg0: i32, %arg1: memref<1xi32, #tpu.memory_space<smem>>, %arg2: memref<8x32xf32, #tpu.memory_space<vmem>>, %arg3: memref<8x32xf32, #tpu.memory_space<vmem>>, %arg4: memref<1x32xf32, #tpu.memory_space<vmem>>, %arg5: memref<1x32xf32, #tpu.memory_space<vmem>>, %arg6: memref<8x32xf32, #tpu.memory_space<vmem>>) attributes {dimension_semantics = [#tpu.dimension_semantics<parallel>], iteration_bounds = array<i64: 2>, scalar_prefetch = 1 : i64, scratch_operands = 0 : i64, tpu.core_type = #tpu.core_type<tc>, window_params = [{transform_indices = @transform_0, window_bounds = array<i64: 8, 32>}, {transform_indices = @transform_1, window_bounds = array<i64: 8, 32>}, {pipeline_mode = #tpu.pipeline_mode<synchronous>, transform_indices = @transform_2, window_bounds = array<i64: 1, 32>}, {pipeline_mode = #tpu.pipeline_mode<synchronous>, transform_indices = @transform_3, window_bounds = array<i64: 1, 32>}, {transform_indices = @transform_4, window_bounds = array<i64: 8, 32>}]} {
    %c0 = arith.constant 0 : index
    %c0_0 = arith.constant 0 : index
    %0 = vector.load %arg3[%c0, %c0_0] : memref<8x32xf32, #tpu.memory_space<vmem>>, vector<8x32xf32>
    %c0_1 = arith.constant 0 : index
    %c0_2 = arith.constant 0 : index
    %1 = vector.load %arg2[%c0_1, %c0_2] : memref<8x32xf32, #tpu.memory_space<vmem>>, vector<8x32xf32>
    %2 = arith.addf %1, %0 : vector<8x32xf32>
    %cst = arith.constant dense<0.000000e+00> : vector<8xf32>
    %3 = vector.multi_reduction <add>, %2, %cst [1] : vector<8x32xf32> to vector<8xf32>
    %4 = vector.shape_cast %3 : vector<8xf32> to vector<8x1xf32>
    %cst_3 = arith.constant 3.200000e+01 : f32
    %5 = vector.broadcast %cst_3 : f32 to vector<8x1xf32>
    %6 = arith.divf %4, %5 : vector<8x1xf32>
    %7 = vector.broadcast %6 : vector<8x1xf32> to vector<8x32xf32>
    %8 = arith.subf %2, %7 : vector<8x32xf32>
    %9 = arith.mulf %8, %8 : vector<8x32xf32>
    %cst_4 = arith.constant dense<0.000000e+00> : vector<8xf32>
    %10 = vector.multi_reduction <add>, %9, %cst_4 [1] : vector<8x32xf32> to vector<8xf32>
    %11 = vector.shape_cast %10 : vector<8xf32> to vector<8x1xf32>
    %cst_5 = arith.constant 3.200000e+01 : f32
    %12 = vector.broadcast %cst_5 : f32 to vector<8x1xf32>
    %13 = arith.divf %11, %12 : vector<8x1xf32>
    %cst_6 = arith.constant 9.99999974E-6 : f32
    %14 = vector.broadcast %cst_6 : f32 to vector<8x1xf32>
    %15 = arith.addf %13, %14 : vector<8x1xf32>
    %16 = math.rsqrt %15 : vector<8x1xf32>
    %c0_7 = arith.constant 0 : index
    %c0_8 = arith.constant 0 : index
    %17 = vector.load %arg4[%c0_7, %c0_8] : memref<1x32xf32, #tpu.memory_space<vmem>>, vector<1x32xf32>
    %18 = vector.broadcast %16 : vector<8x1xf32> to vector<8x32xf32>
    %19 = vector.broadcast %17 : vector<1x32xf32> to vector<8x32xf32>
    %20 = arith.mulf %18, %19 : vector<8x32xf32>
    %21 = arith.mulf %8, %20 : vector<8x32xf32>
    %c0_9 = arith.constant 0 : index
    %c0_10 = arith.constant 0 : index
    %22 = vector.load %arg5[%c0_9, %c0_10] : memref<1x32xf32, #tpu.memory_space<vmem>>, vector<1x32xf32>
    %23 = vector.broadcast %22 : vector<1x32xf32> to vector<8x32xf32>
    %24 = arith.addf %21, %23 : vector<8x32xf32>
    %c0_11 = arith.constant 0 : index
    %c0_12 = arith.constant 0 : index
    %25 = vector.load %arg6[%c0_11, %c0_12] : memref<8x32xf32, #tpu.memory_space<vmem>>, vector<8x32xf32>
    tpu.vector_store %arg6[%c0_11, %c0_12], %24 {strides = array<i32>} : memref<8x32xf32, #tpu.memory_space<vmem>>, vector<8x32xf32>,
    return
  }
  func.func @transform_0(%arg0: i32, %arg1: memref<1xi32, #tpu.memory_space<smem>>) -> (i32, i32) {
    %c0_i32 = arith.constant 0 : i32
    %c0_i32_0 = arith.constant 0 : i32
    return %arg0, %c0_i32 : i32, i32
  }
  func.func @transform_1(%arg0: i32, %arg1: memref<1xi32, #tpu.memory_space<smem>>) -> (i32, i32) {
    %c0_i32 = arith.constant 0 : i32
    %c0_i32_0 = arith.constant 0 : i32
    return %arg0, %c0_i32 : i32, i32
  }
  func.func @transform_2(%arg0: i32, %arg1: memref<1xi32, #tpu.memory_space<smem>>) -> (i32, i32) {
    %c0_i32 = arith.constant 0 : i32
    %c0_i32_0 = arith.constant 0 : i32
    %c0_i32_1 = arith.constant 0 : i32
    return %c0_i32, %c0_i32_0 : i32, i32
  }
  func.func @transform_3(%arg0: i32, %arg1: memref<1xi32, #tpu.memory_space<smem>>) -> (i32, i32) {
    %c0_i32 = arith.constant 0 : i32
    %c0_i32_0 = arith.constant 0 : i32
    %c0_i32_1 = arith.constant 0 : i32
    return %c0_i32, %c0_i32_0 : i32, i32
  }
  func.func @transform_4(%arg0: i32, %arg1: memref<1xi32, #tpu.memory_space<smem>>) -> (i32, i32) {
    %c0_i32 = arith.constant 0 : i32
    %c0_i32_0 = arith.constant 0 : i32
    return %arg0, %c0_i32 : i32, i32
  }
}

</mosaic_0001>

<llo_original>
// kernel: tpu_custom_call.1
$region0: #{tpu_custom_call.1}
  #allocation0 [shape = 'u32[]', space=smem, size = 0x4, offset = 0x4, fixed_abs, tag = 'smem constant byte address 0x4 - core index']
  #allocation1 [shape = 'u32[144,128]{1,0:T(1,128)}', space=vmem, size = 0x12000, scoped, tag = 'internal scratch']
  #allocation2 [shape = 's32[1]{0}', space=sflag, size = 0x4, scoped, tag = 'scoped memory for tpu_custom_call.1']
  #allocation3 [shape = 's32[1]{0:T(128)S(6)}', space=smem, size = 0x200, scoped, tag = 'prefetched SMEM operand 0']
  %s0 = inlined_call_operand.<no memory space> [shape: s32[1], index: 0, kind: input, shape index: {}]
  %s1 = inlined_call_operand.hbm [shape: f32[16,32], index: 1, kind: input, shape index: {}]
  %s2 = inlined_call_operand.hbm [shape: f32[16,32], index: 2, kind: input, shape index: {}]
  %s3 = inlined_call_operand.vmem [shape: f32[1,32], index: 3, kind: input, shape index: {}]
  %s4 = inlined_call_operand.vmem [shape: f32[1,32], index: 4, kind: input, shape index: {}]
  %s5 = inlined_call_operand.hbm [shape: f32[16,32], index: 5, kind: output, shape index: {}]
  %s6 = sld [smem:[#allocation0]]
  $region57: #{tpu_custom_call.1} parent=0
    _
  %s8 = ssub.s32 1, %s6
  %s9 = scalar_select 0, %s8, %s6
  %10 = sst [smem:[#allocation3]] %s0
  $region1: #{tpu_custom_call.1} parent=0
    #allocation4 [shape = 'u8[8192]{0}', space=vmem, size = 0x2000, scoped, tag = 'input window, operand 1']
    #allocation5 [shape = 's32[2]{0}', space=sflag, size = 0x8, scoped, tag = 'scoped memory for tpu_custom_call.1']
    #allocation6 [shape = 's32[2]{0}', space=sflag, size = 0x8, scoped, tag = 'scoped memory for tpu_custom_call.1']
    #allocation7 [shape = 'u8[8192]{0}', space=vmem, size = 0x2000, scoped, tag = 'input window, operand 2']
    #allocation8 [shape = 's32[2]{0}', space=sflag, size = 0x8, scoped, tag = 'scoped memory for tpu_custom_call.1']
    #allocation9 [shape = 'u8[8192]{0}', space=vmem, size = 0x2000, scoped, tag = 'output window, operand 0']
    %11 = vsyncpa [#allocation5], 0
    %s12 = scalar_lea.sflag [#allocation5], 1
    %13 = vsyncpa %s12, 0
    %14 = vsyncpa [#allocation8], 0
    %s15 = scalar_lea.sflag [#allocation8], 1
    %16 = vsyncpa %s15, 0
    %17 = vsyncpa [#allocation6], 0
    %s18 = scalar_lea.sflag [#allocation6], 1
    %19 = vsyncpa %s18, 0
    loop: start=0, step=1, limit=4
    $region2: #{tpu_custom_call.1} parent=1 // loop_pre_header
      _
    $region3: #{tpu_custom_call.1} parent=1 // loop_header
      %s21 = sphi 0, %s25
      %p22 = scmp.ge.s32.totalorder %s21, 4
      %s31 = sphi 0, %s33
      %s34 = sphi 0, %s31
      %s35 = sphi 0, %s34
      %s51 = sphi 0, %s35
      %s57 = sphi 0, %s59
      %s60 = sphi 0, %s57
      %s61 = sphi 0, %s60
      %s77 = sphi 0, %s61
      %s81 = sphi 0, %s81
      %s83 = sphi 0, %s81
      %s84 = sphi 0, %s83
      %s98 = sphi 0, %s84
      %s102 = sphi 0, %s102
      %s104 = sphi 0, %s102
      %s105 = sphi 0, %s104
      %s119 = sphi 0, %s105
      %s125 = sphi 0, %s127
      %s128 = sphi 0, %s125
      %s129 = sphi 0, %s128
      %s145 = sphi 0, %s129
    $region4: #{tpu_custom_call.1} parent=1 // loop_header_branch
      %24 = sbr.rel (%p22) target = $region8
    $region5: #{tpu_custom_call.1} parent=1 // loop_body
      %s26 = ssub.s32 %s21, 1
      %s27 = ssub.s32 %s21, 2
      %s28 = sadd.s32 %s21, 1
      %s29 = ssub.s32 %s21, %s28
      %p30 = scmp.eq.s32.totalorder %s29, 0
      %s32 = sadd.s32 %s31, 1
      %s33 = scalar_select %p30, %s31, %s32
      %p36 = pneg %p30
      %p37 = scmp.eq.s32.totalorder %s21, 1
      %p38 = por %p36, %p37
      %p39 = scmp.ne.s32.totalorder %s31, %s34
      %p40 = scmp.eq.s32.totalorder %s21, 0
      %p41 = por %p39, %p40
      %p42 = scmp.ne.s32.totalorder %s31, %s34
      %p43 = scmp.eq.s32.totalorder %s26, 1
      %p44 = por %p42, %p43
      %p45 = scmp.ne.s32.totalorder %s34, %s35
      %p46 = scmp.eq.s32.totalorder %s26, 0
      %p47 = por %p45, %p46
      %p48 = scmp.ne.s32.totalorder %s34, %s35
      %p49 = scmp.eq.s32.totalorder %s27, 1
      %p50 = por %p48, %p49
      %p52 = scmp.ne.s32.totalorder %s35, %s51
      %p53 = scmp.eq.s32.totalorder %s27, 0
      %p54 = por %p52, %p53
      %s55 = ssub.s32 %s21, %s28
      %p56 = scmp.eq.s32.totalorder %s55, 0
      %s58 = sadd.s32 %s57, 1
      %s59 = scalar_select %p56, %s57, %s58
      %p62 = pneg %p56
      %p63 = scmp.eq.s32.totalorder %s21, 1
      %p64 = por %p62, %p63
      %p65 = scmp.ne.s32.totalorder %s57, %s60
      %p66 = scmp.eq.s32.totalorder %s21, 0
      %p67 = por %p65, %p66
      %p68 = scmp.ne.s32.totalorder %s57, %s60
      %p69 = scmp.eq.s32.totalorder %s26, 1
      %p70 = por %p68, %p69
      %p71 = scmp.ne.s32.totalorder %s60, %s61
      %p72 = scmp.eq.s32.totalorder %s26, 0
      %p73 = por %p71, %p72
      %p74 = scmp.ne.s32.totalorder %s60, %s61
      %p75 = scmp.eq.s32.totalorder %s27, 1
      %p76 = por %p74, %p75
      %p78 = scmp.ne.s32.totalorder %s61, %s77
      %p79 = scmp.eq.s32.totalorder %s27, 0
      %p80 = por %p78, %p79
      %s82 = sadd.s32 %s81, 1
      %p85 = scmp.eq.s32.totalorder %s21, 1
      %p86 = scmp.ne.s32.totalorder %s81, %s83
      %p87 = scmp.eq.s32.totalorder %s21, 0
      %p88 = por %p86, %p87
      %p89 = scmp.ne.s32.totalorder %s81, %s83
      %p90 = scmp.eq.s32.totalorder %s26, 1
      %p91 = por %p89, %p90
      %p92 = scmp.ne.s32.totalorder %s83, %s84
      %p93 = scmp.eq.s32.totalorder %s26, 0
      %p94 = por %p92, %p93
      %p95 = scmp.ne.s32.totalorder %s83, %s84
      %p96 = scmp.eq.s32.totalorder %s27, 1
      %p97 = por %p95, %p96
      %p99 = scmp.ne.s32.totalorder %s84, %s98
      %p100 = scmp.eq.s32.totalorder %s27, 0
      %p101 = por %p99, %p100
      %s103 = sadd.s32 %s102, 1
      %p106 = scmp.eq.s32.totalorder %s21, 1
      %p107 = scmp.ne.s32.totalorder %s102, %s104
      %p108 = scmp.eq.s32.totalorder %s21, 0
      %p109 = por %p107, %p108
      %p110 = scmp.ne.s32.totalorder %s102, %s104
      %p111 = scmp.eq.s32.totalorder %s26, 1
      %p112 = por %p110, %p111
      %p113 = scmp.ne.s32.totalorder %s104, %s105
      %p114 = scmp.eq.s32.totalorder %s26, 0
      %p115 = por %p113, %p114
      %p116 = scmp.ne.s32.totalorder %s104, %s105
      %p117 = scmp.eq.s32.totalorder %s27, 1
      %p118 = por %p116, %p117
      %p120 = scmp.ne.s32.totalorder %s105, %s119
      %p121 = scmp.eq.s32.totalorder %s27, 0
      %p122 = por %p120, %p121
      %s123 = ssub.s32 %s21, %s28
      %p124 = scmp.eq.s32.totalorder %s123, 0
      %s126 = sadd.s32 %s125, 1
      %s127 = scalar_select %p124, %s125, %s126
      %p130 = pneg %p124
      %p131 = scmp.eq.s32.totalorder %s21, 1
      %p132 = por %p130, %p131
      %p133 = scmp.ne.s32.totalorder %s125, %s128
      %p134 = scmp.eq.s32.totalorder %s21, 0
      %p135 = por %p133, %p134
      %p136 = scmp.ne.s32.totalorder %s125, %s128
      %p137 = scmp.eq.s32.totalorder %s26, 1
      %p138 = por %p136, %p137
      %p139 = scmp.ne.s32.totalorder %s128, %s129
      %p140 = scmp.eq.s32.totalorder %s26, 0
      %p141 = por %p139, %p140
      %p142 = scmp.ne.s32.totalorder %s128, %s129
      %p143 = scmp.eq.s32.totalorder %s27, 1
      %p144 = por %p142, %p143
      %p146 = scmp.ne.s32.totalorder %s129, %s145
      %p147 = scmp.eq.s32.totalorder %s27, 0
      %p148 = por %p146, %p147
      %p149 = scmp.le.s32.totalorder 1, %s21
      %p150 = scmp.lt.s32.totalorder %s21, 3
      %p151 = pnand %p149, %p150
      %p152 = pneg %p151
      // Predicated region
      $region9: #{tpu_custom_call.1} parent=5 // pred_check
        _
      $region10: #{tpu_custom_call.1} parent=5 // pred_check_branch
        %154 = sbr.rel (%p151) target = $region12
      $region11: #{tpu_custom_call.1} parent=5 // pred_region
        %s155 = ssub.s32 %s21, 1
        // Predicated region
        $region13: #{tpu_custom_call.1} parent=11 // pred_check
          %p156 = pneg %p94
        $region14: #{tpu_custom_call.1} parent=11 // pred_check_branch
          %158 = sbr.rel (%p156) target = $region16
        $region15: #{tpu_custom_call.1} parent=11 // pred_region
          _
        $region16: #{tpu_custom_call.1} parent=11 // pred_fallthru
          _
        // Predicated region
        $region17: #{tpu_custom_call.1} parent=11 // pred_check
          %p159 = pneg %p115
        $region18: #{tpu_custom_call.1} parent=11 // pred_check_branch
          %161 = sbr.rel (%p159) target = $region20
        $region19: #{tpu_custom_call.1} parent=11 // pred_region
          _
        $region20: #{tpu_custom_call.1} parent=11 // pred_fallthru
          _
      $region12: #{tpu_custom_call.1} parent=5 // pred_fallthru
        _
      %p162 = scmp.lt.s32.totalorder %s21, 2
      // Predicated region
      $region21: #{tpu_custom_call.1} parent=5 // pred_check
        %p163 = pneg %p162
      $region22: #{tpu_custom_call.1} parent=5 // pred_check_branch
        %165 = sbr.rel (%p163) target = $region24
      $region23: #{tpu_custom_call.1} parent=5 // pred_region
        // Predicated region
        $region25: #{tpu_custom_call.1} parent=23 // pred_check
          %p166 = pneg %p41
        $region26: #{tpu_custom_call.1} parent=23 // pred_check_branch
          %168 = sbr.rel (%p166) target = $region28
        $region27: #{tpu_custom_call.1} parent=23 // pred_region
          %s169 = sand.u32 %s31, 1
          %s170 = scalar_lea.sflag [#allocation5], %s169
          %s171 = sand.u32 %s31, 1
          %s172 = smul.addr %s171, 8
          %s173 = scalar_lea.vmem [#allocation4], %s172
          %s175 = ssub.s32 128, 128
          %176 = vsyncadd %s170, %s175
          %s177 = smul.addr %s21, 128
          %s178 = scalar_lea.hbm %s1, %s177
          %s180 = sshll.u32 %s173, 4
          %s181 = int_to_ptr.vmem [resolvable:$true] %s180
          %183 = dma.hbm_to_vmem [thread:$0]  %s178, 128, %s181, %s170
        $region28: #{tpu_custom_call.1} parent=23 // pred_fallthru
          _
        // Predicated region
        $region29: #{tpu_custom_call.1} parent=23 // pred_check
          %p184 = pneg %p67
        $region30: #{tpu_custom_call.1} parent=23 // pred_check_branch
          %186 = sbr.rel (%p184) target = $region32
        $region31: #{tpu_custom_call.1} parent=23 // pred_region
          %s187 = sand.u32 %s57, 1
          %s188 = scalar_lea.sflag [#allocation8], %s187
          %s189 = sand.u32 %s57, 1
          %s190 = smul.addr %s189, 8
          %s191 = scalar_lea.vmem [#allocation7], %s190
          %s193 = ssub.s32 128, 128
          %194 = vsyncadd %s188, %s193
          %s195 = smul.addr %s21, 128
          %s196 = scalar_lea.hbm %s2, %s195
          %s198 = sshll.u32 %s191, 4
          %s199 = int_to_ptr.vmem [resolvable:$true] %s198
          %201 = dma.hbm_to_vmem [thread:$0]  %s196, 128, %s199, %s188
        $region32: #{tpu_custom_call.1} parent=23 // pred_fallthru
          _
      $region24: #{tpu_custom_call.1} parent=5 // pred_fallthru
        _
      %p202 = scmp.le.s32.totalorder 1, %s21
      %p203 = scmp.lt.s32.totalorder %s21, 3
      %p204 = pnand %p202, %p203
      %p205 = pneg %p204
      // Predicated region
      $region33: #{tpu_custom_call.1} parent=5 // pred_check
        _
      $region34: #{tpu_custom_call.1} parent=5 // pred_check_branch
        %207 = sbr.rel (%p204) target = $region36
      $region35: #{tpu_custom_call.1} parent=5 // pred_region
        %s208 = ssub.s32 %s21, 1
        %s209 = sand.u32 %s34, 1
        %s210 = scalar_lea.sflag [#allocation5], %s209
        %s211 = sand.u32 %s34, 1
        %s212 = smul.addr %s211, 8
        %s213 = scalar_lea.vmem [#allocation4], %s212
        // Predicated region
        $region37: #{tpu_custom_call.1} parent=35 // pred_check
          %p214 = pneg %p47
        $region38: #{tpu_custom_call.1} parent=35 // pred_check_branch
          %216 = sbr.rel (%p214) target = $region40
        $region39: #{tpu_custom_call.1} parent=35 // pred_region
          %217 = dma.done %s210, 128
        $region40: #{tpu_custom_call.1} parent=35 // pred_fallthru
          _
        %s218 = sand.u32 %s60, 1
        %s219 = scalar_lea.sflag [#allocation8], %s218
        %s220 = sand.u32 %s60, 1
        %s221 = smul.addr %s220, 8
        %s222 = scalar_lea.vmem [#allocation7], %s221
        // Predicated region
        $region41: #{tpu_custom_call.1} parent=35 // pred_check
          %p223 = pneg %p73
        $region42: #{tpu_custom_call.1} parent=35 // pred_check_branch
          %225 = sbr.rel (%p223) target = $region44
        $region43: #{tpu_custom_call.1} parent=35 // pred_region
          %226 = dma.done %s219, 128
        $region44: #{tpu_custom_call.1} parent=35 // pred_fallthru
          _
        %s227 = sand.u32 %s34, 1
        %s228 = scalar_lea.sflag [#allocation5], %s227
        %s229 = sand.u32 %s34, 1
        %s230 = smul.addr %s229, 8
        %s231 = scalar_lea.vmem [#allocation4], %s230
        %p232 = pneg %p47
        %p233 = pneg %p44
        %s234 = sand.u32 %s60, 1
        %s235 = scalar_lea.sflag [#allocation8], %s234
        %s236 = sand.u32 %s60, 1
        %s237 = smul.addr %s236, 8
        %s238 = scalar_lea.vmem [#allocation7], %s237
        %p239 = pneg %p73
        %p240 = pneg %p70
        %p241 = pneg %p94
        %p242 = pneg %p91
        %p243 = pneg %p115
        %p244 = pneg %p112
        %p245 = pneg %p141
        %p246 = pneg %p138
        %s247 = sand.u32 %s128, 1
        %s248 = scalar_lea.sflag [#allocation6], %s247
        %s249 = sand.u32 %s128, 1
        %s250 = smul.addr %s249, 8
        %s251 = scalar_lea.vmem [#allocation9], %s250
        %v252 = vld [vmem:[%s222] sm:$0xff]
        %v253 = vld [vmem:[%s213] sm:$0xff]
        %v254 = vadd.f32 %v253, %v252
        %vm255 = vcmask 261120
        %v256 = vsel %vm255, %v254, 0.0
        %257 = vadd.xlane.f32.xlu0 %v256
        %v258 = vpop.xlane.xlu0 %257
        %v259 = vrcp.pop 32.0
        %v260 = vmul.f32 %v258, %v259
        %v261 = vsub.f32 %v254, %v260
        %v262 = vmul.f32 %v261, %v261
        %v263 = vsel %vm255, %v262, 0.0
        %264 = vadd.xlane.f32.xlu0 %v263
        %v265 = vpop.xlane.xlu0 %264
        %v266 = vmul.f32 %v265, %v259
        %v267 = vadd.f32 %v266, 1e-05
        %v268 = vrsqrt.pop %v267
        %v269 = vld [vmem:[%s3] sm:$0x1]
        %v271 = vlaneseq
        %v272 = vshrl.u32 %v271, 7
        %v273 = vsub.s32 0, %v272
        %v274 = vrot.slane %v269, %v273
        %v276 = vmul.f32 %v268, %v274
        %v277 = vmul.f32 %v261, %v276
        %v278 = vld [vmem:[%s4] sm:$0x1]
        %v280 = vlaneseq
        %v281 = vshrl.u32 %v280, 7
        %v282 = vsub.s32 0, %v281
        %v283 = vrot.slane %v278, %v282
        %v285 = vadd.f32 %v277, %v283
        %286 = vst.msk [vmem:[%s251] sm:$0xff] %vm255, %v285
        %s287 = sand.u32 %s128, 1
        %s288 = scalar_lea.sflag [#allocation6], %s287
        %s289 = sand.u32 %s128, 1
        %s290 = smul.addr %s289, 8
        %s291 = scalar_lea.vmem [#allocation9], %s290
        // Predicated region
        $region45: #{tpu_custom_call.1} parent=35 // pred_check
          %p292 = pneg %p138
        $region46: #{tpu_custom_call.1} parent=35 // pred_check_branch
          %294 = sbr.rel (%p292) target = $region48
        $region47: #{tpu_custom_call.1} parent=35 // pred_region
          %s296 = ssub.s32 128, 128
          %297 = vsyncadd %s288, %s296
          %s298 = smul.addr %s26, 128
          %s299 = scalar_lea.hbm %s5, %s298
          %s301 = sshll.u32 %s291, 4
          %s302 = int_to_ptr.vmem [resolvable:$true] %s301
          %304 = dma.vmem_to_hbm [thread:$0]  %s302, 128, %s299, %s288
        $region48: #{tpu_custom_call.1} parent=35 // pred_fallthru
          _
      $region36: #{tpu_custom_call.1} parent=5 // pred_fallthru
        _
      %p305 = scmp.le.s32.totalorder 2, %s21
      // Predicated region
      $region49: #{tpu_custom_call.1} parent=5 // pred_check
        %p306 = pneg %p305
      $region50: #{tpu_custom_call.1} parent=5 // pred_check_branch
        %308 = sbr.rel (%p306) target = $region52
      $region51: #{tpu_custom_call.1} parent=5 // pred_region
        %s309 = ssub.s32 %s21, 2
        // Predicated region
        $region53: #{tpu_custom_call.1} parent=51 // pred_check
          %p310 = pneg %p144
        $region54: #{tpu_custom_call.1} parent=51 // pred_check_branch
          %312 = sbr.rel (%p310) target = $region56
        $region55: #{tpu_custom_call.1} parent=51 // pred_region
          %s313 = sand.u32 %s129, 1
          %s314 = scalar_lea.sflag [#allocation6], %s313
          %s315 = sand.u32 %s129, 1
          %s316 = smul.addr %s315, 8
          %s317 = scalar_lea.vmem [#allocation9], %s316
          %318 = dma.done %s314, 128
        $region56: #{tpu_custom_call.1} parent=51 // pred_fallthru
          _
      $region52: #{tpu_custom_call.1} parent=5 // pred_fallthru
        _
    $region6: #{tpu_custom_call.1} parent=1 // loop_footer
      %s25 = sadd.s32 1, %s21
    $region7: #{tpu_custom_call.1} parent=1 // loop_footer_branch
      %20 = sbr.rel target = $region3
    $region8: #{tpu_custom_call.1} parent=1 // loop_exit
      _
    %319 = vsyncpa [#allocation5], 1
    %s320 = scalar_lea.sflag [#allocation5], 1
    %321 = vsyncpa %s320, 1
    %322 = vsyncpa [#allocation8], 1
    %s323 = scalar_lea.sflag [#allocation8], 1
    %324 = vsyncpa %s323, 1
    %325 = vsyncpa [#allocation6], 1
    %s326 = scalar_lea.sflag [#allocation6], 1
    %327 = vsyncpa %s326, 1

</llo_original>
